<compile_context>
chip_gen: v7x
topology: tpu7x:2x2x1
jax: 0.10.0
libtpu: 0.0.40
codegen_flags: <defaults>
</compile_context>

<pallas_src>
import jax
import jax.numpy as jnp
from jax.experimental import pallas as pl
from jax.experimental.pallas import tpu as pltpu


_FUSED_MAX_NODES = 256   # n_pad threshold for the single fused kernel path


# ----------------------------- kernels ------------------------------------ #

def fused_kernel(adj_ref, emb_ref, p_ref, t_ref, wd_ref, bd_ref,
                 w1x_ref, w1p_ref, w1t_ref, b1_ref, w2_ref, b2_ref, out_ref):
    """Whole forward for small graphs; everything stays in VMEM."""
    # pooled_output = dense(embedding); h = tanh(pooled_output)  (f32 math)
    h = jnp.tanh(
        jnp.dot(emb_ref[...], wd_ref[...], preferred_element_type=jnp.float32)
        + bd_ref[...])
    # cat([h, p_num, text_len], dim=1) @ W1 as a split matmul.
    z1 = (jnp.dot(h.astype(jnp.bfloat16), w1x_ref[...],
                  preferred_element_type=jnp.float32)
          + p_ref[...] * w1p_ref[...]
          + t_ref[...] * w1t_ref[...])
    adj = adj_ref[...]
    # GCNConv #1 + ReLU (dropout == identity).
    g1 = jnp.maximum(
        jnp.dot(adj, z1.astype(jnp.bfloat16),
                preferred_element_type=jnp.float32) + b1_ref[...], 0.0)
    # GCNConv #2, reassociated as A_hat @ (g1 @ W2) so both adj matmuls keep a
    # 128-wide (lane-dense) RHS.
    gw = jnp.dot(g1.astype(jnp.bfloat16), w2_ref[...],
                 preferred_element_type=jnp.float32)
    out_ref[...] = (jnp.dot(adj, gw.astype(jnp.bfloat16),
                            preferred_element_type=jnp.float32)
                    + b2_ref[...])


def node_feat_kernel(emb_ref, p_ref, t_ref, wd_ref, bd_ref,
                     w1x_ref, w1p_ref, w1t_ref, z1_ref):
    h = jnp.tanh(
        jnp.dot(emb_ref[...], wd_ref[...], preferred_element_type=jnp.float32)
        + bd_ref[...])
    z1 = (jnp.dot(h.astype(jnp.bfloat16), w1x_ref[...],
                  preferred_element_type=jnp.float32)
          + p_ref[...] * w1p_ref[...]
          + t_ref[...] * w1t_ref[...])
    z1_ref[...] = z1.astype(jnp.bfloat16)


def agg1_kernel(adj_ref, z1_ref, b1_ref, g1_ref, acc_ref):
    k = pl.program_id(1)

    @pl.when(k == 0)
    def _():
        acc_ref[...] = jnp.zeros_like(acc_ref)

    acc_ref[...] += jnp.dot(adj_ref[...], z1_ref[...],
                            preferred_element_type=jnp.float32)

    @pl.when(k == pl.num_programs(1) - 1)
    def _():
        # GCNConv #1: A_hat @ (X W1) + b1, then ReLU (dropout == identity).
        g1_ref[...] = jnp.maximum(acc_ref[...] + b1_ref[...], 0.0
                                  ).astype(jnp.bfloat16)


def agg2_kernel(adj_ref, g1_ref, w2_ref, b2_ref, out_ref, acc_ref):
    k = pl.program_id(1)

    @pl.when(k == 0)
    def _():
        acc_ref[...] = jnp.zeros_like(acc_ref)

    # Reassociated GCNConv #2: (A_hat @ g1) @ W2 + b2 == A_hat @ (g1 W2) + b2.
    acc_ref[...] += jnp.dot(adj_ref[...], g1_ref[...],
                            preferred_element_type=jnp.float32)

    @pl.when(k == pl.num_programs(1) - 1)
    def _():
        out_ref[...] = (jnp.dot(acc_ref[...].astype(jnp.bfloat16), w2_ref[...],
                                preferred_element_type=jnp.float32)
                        + b2_ref[...])


# ----------------------------- glue / wrapper ------------------------------ #

def _round_up(x, m):
    return ((x + m - 1) // m) * m


def gcn_norm_dense(edge_index, edge_weight, num_nodes, n_pad, improved=True):
    """Dense A_hat = D^{-1/2} (A + fill*I) D^{-1/2}, matching PyG gcn_norm,
    zero-padded to (n_pad, n_pad)."""
    fill = 2.0 if improved else 1.0
    src, dst = edge_index[0], edge_index[1]
    A = jnp.zeros((num_nodes, num_nodes), jnp.float32)
    # A[dst, src] = weight of edge src -> dst (aggregate over sources).
    A = A.at[dst, src].add(edge_weight.astype(jnp.float32))
    A = A + fill * jnp.eye(num_nodes, dtype=jnp.float32)
    deg = A.sum(axis=1)
    dinv = jnp.where(deg > 0.0, 1.0 / jnp.sqrt(deg), 0.0)
    A_hat = dinv[:, None] * A * dinv[None, :]
    return jnp.zeros((n_pad, n_pad), jnp.float32).at[:num_nodes, :num_nodes].set(A_hat)


def _forward_fused(adj, emb_p, p_p, t_p, wd, bd, w1x, w1p, w1t, b1, w2p, b2p,
                   *, n_pad, hidden, gcn_hidden, c_pad):
    return pl.pallas_call(
        fused_kernel,
        out_shape=jax.ShapeDtypeStruct((n_pad, c_pad), jnp.float32),
        grid=(1,),
        in_specs=[
            pl.BlockSpec((n_pad, n_pad), lambda i: (0, 0)),
            pl.BlockSpec((n_pad, hidden), lambda i: (0, 0)),
            pl.BlockSpec((n_pad, 1), lambda i: (0, 0)),
            pl.BlockSpec((n_pad, 1), lambda i: (0, 0)),
            pl.BlockSpec((hidden, hidden), lambda i: (0, 0)),
            pl.BlockSpec((1, hidden), lambda i: (0, 0)),
            pl.BlockSpec((hidden, gcn_hidden), lambda i: (0, 0)),
            pl.BlockSpec((1, gcn_hidden), lambda i: (0, 0)),
            pl.BlockSpec((1, gcn_hidden), lambda i: (0, 0)),
            pl.BlockSpec((1, gcn_hidden), lambda i: (0, 0)),
            pl.BlockSpec((gcn_hidden, c_pad), lambda i: (0, 0)),
            pl.BlockSpec((1, c_pad), lambda i: (0, 0)),
        ],
        out_specs=pl.BlockSpec((n_pad, c_pad), lambda i: (0, 0)),
        compiler_params=pltpu.CompilerParams(dimension_semantics=("arbitrary",)),
        cost_estimate=pl.CostEstimate(
            flops=(2 * n_pad * hidden * hidden
                   + 2 * n_pad * hidden * gcn_hidden
                   + 2 * n_pad * n_pad * gcn_hidden
                   + 2 * n_pad * gcn_hidden * c_pad
                   + 2 * n_pad * n_pad * c_pad),
            transcendentals=n_pad * hidden,
            bytes_accessed=(n_pad * n_pad * 2 + n_pad * hidden * 2
                            + hidden * hidden * 2 + hidden * gcn_hidden * 2
                            + gcn_hidden * c_pad * 2 + n_pad * c_pad * 4),
        ),
    )(adj, emb_p, p_p, t_p, wd, bd, w1x, w1p, w1t, b1, w2p, b2p)


def _forward_tiled(adj, emb_p, p_p, t_p, wd, bd, w1x, w1p, w1t, b1, w2p, b2p,
                   *, n_pad, hidden, gcn_hidden, c_pad, tm, tk):
    # ---- kernel 1: per-node features z1 = [h|p|t] @ W1 ---- #
    z1 = pl.pallas_call(
        node_feat_kernel,
        out_shape=jax.ShapeDtypeStruct((n_pad, gcn_hidden), jnp.bfloat16),
        grid=(n_pad // tm,),
        in_specs=[
            pl.BlockSpec((tm, hidden), lambda i: (i, 0)),
            pl.BlockSpec((tm, 1), lambda i: (i, 0)),
            pl.BlockSpec((tm, 1), lambda i: (i, 0)),
            pl.BlockSpec((hidden, hidden), lambda i: (0, 0)),
            pl.BlockSpec((1, hidden), lambda i: (0, 0)),
            pl.BlockSpec((hidden, gcn_hidden), lambda i: (0, 0)),
            pl.BlockSpec((1, gcn_hidden), lambda i: (0, 0)),
            pl.BlockSpec((1, gcn_hidden), lambda i: (0, 0)),
        ],
        out_specs=pl.BlockSpec((tm, gcn_hidden), lambda i: (i, 0)),
        compiler_params=pltpu.CompilerParams(dimension_semantics=("parallel",)),
        cost_estimate=pl.CostEstimate(
            flops=2 * n_pad * hidden * (hidden + gcn_hidden),
            transcendentals=n_pad * hidden,
            bytes_accessed=(n_pad * hidden * 2 + hidden * hidden * 2
                            + hidden * gcn_hidden * 2 + n_pad * gcn_hidden * 2),
        ),
    )(emb_p, p_p, t_p, wd, bd, w1x, w1p, w1t)

    grid_agg = (n_pad // tm, n_pad // tk)
    agg_semantics = pltpu.CompilerParams(
        dimension_semantics=("parallel", "arbitrary"))

    # ---- kernel 2: g1 = relu(A_hat @ z1 + b1), tiled over (rows, K) ---- #
    g1 = pl.pallas_call(
        agg1_kernel,
        out_shape=jax.ShapeDtypeStruct((n_pad, gcn_hidden), jnp.bfloat16),
        grid=grid_agg,
        in_specs=[
            pl.BlockSpec((tm, tk), lambda i, k: (i, k)),
            pl.BlockSpec((tk, gcn_hidden), lambda i, k: (k, 0)),
            pl.BlockSpec((1, gcn_hidden), lambda i, k: (0, 0)),
        ],
        out_specs=pl.BlockSpec((tm, gcn_hidden), lambda i, k: (i, 0)),
        scratch_shapes=[pltpu.VMEM((tm, gcn_hidden), jnp.float32)],
        compiler_params=agg_semantics,
        cost_estimate=pl.CostEstimate(
            flops=2 * n_pad * n_pad * gcn_hidden,
            transcendentals=0,
            bytes_accessed=n_pad * n_pad * 2 + 2 * n_pad * gcn_hidden * 2,
        ),
    )(adj, z1, b1)

    # ---- kernel 3: out = (A_hat @ g1) @ W2_pad + b2_pad, lane-dense ---- #
    return pl.pallas_call(
        agg2_kernel,
        out_shape=jax.ShapeDtypeStruct((n_pad, c_pad), jnp.float32),
        grid=grid_agg,
        in_specs=[
            pl.BlockSpec((tm, tk), lambda i, k: (i, k)),
            pl.BlockSpec((tk, gcn_hidden), lambda i, k: (k, 0)),
            pl.BlockSpec((gcn_hidden, c_pad), lambda i, k: (0, 0)),
            pl.BlockSpec((1, c_pad), lambda i, k: (0, 0)),
        ],
        out_specs=pl.BlockSpec((tm, c_pad), lambda i, k: (i, 0)),
        scratch_shapes=[pltpu.VMEM((tm, gcn_hidden), jnp.float32)],
        compiler_params=agg_semantics,
        cost_estimate=pl.CostEstimate(
            flops=2 * n_pad * n_pad * gcn_hidden + 2 * n_pad * gcn_hidden * c_pad,
            transcendentals=0,
            bytes_accessed=(n_pad * n_pad * 2 + n_pad * gcn_hidden * 2
                            + n_pad * c_pad * 4),
        ),
    )(adj, g1, w2p, b2p)


def bert_gcn_forward(embedding, p_num, text_len, edge_index, edge_weight, params):
    n, hidden = embedding.shape
    gcn_hidden = params["w1"].shape[1]       # 128 in the module
    n_classes = params["w2"].shape[1]

    # Tile sizes: 256 at realistic N (>=85% of HBM roofline), 128 for tiny N.
    tm = tk = 128 if n <= 128 else 256
    n_pad = _round_up(n, tm)
    c_pad = _round_up(max(n_classes, 1), 128)   # lane-dense output width

    # Dense normalized adjacency, bf16 on HBM (halves DMA bytes + VMEM).
    adj = gcn_norm_dense(edge_index, edge_weight, n, n_pad,
                         improved=True).astype(jnp.bfloat16)

    # Zero-pad node inputs to n_pad rows; bf16 for MXU operands.
    emb_p = jnp.zeros((n_pad, hidden), jnp.bfloat16
                      ).at[:n].set(embedding.astype(jnp.bfloat16))
    p_p = jnp.zeros((n_pad, 1), jnp.float32).at[:n].set(p_num.astype(jnp.float32))
    t_p = jnp.zeros((n_pad, 1), jnp.float32).at[:n].set(text_len.astype(jnp.float32))

    # Split conv1 weight rows: [hidden rows | p_num row | text_len row].
    w1 = params["w1"]
    w1x = w1[:hidden, :].astype(jnp.bfloat16)
    w1p = w1[hidden:hidden + 1, :].astype(jnp.float32)
    w1t = w1[hidden + 1:hidden + 2, :].astype(jnp.float32)
    wd = params["wd"].astype(jnp.bfloat16)
    bd = params["bd"].reshape(1, -1).astype(jnp.float32)
    b1 = params["b1"].reshape(1, -1).astype(jnp.float32)
    # Pad the classifier to a lane-dense 128-wide output (zeros beyond n_classes).
    w2p = jnp.zeros((gcn_hidden, c_pad), jnp.bfloat16
                    ).at[:, :n_classes].set(params["w2"].astype(jnp.bfloat16))
    b2p = jnp.zeros((1, c_pad), jnp.float32
                    ).at[:, :n_classes].set(params["b2"].reshape(1, -1).astype(jnp.float32))

    if n_pad <= _FUSED_MAX_NODES:
        out_pad = _forward_fused(adj, emb_p, p_p, t_p, wd, bd, w1x, w1p, w1t,
                                 b1, w2p, b2p, n_pad=n_pad, hidden=hidden,
                                 gcn_hidden=gcn_hidden, c_pad=c_pad)
    else:
        out_pad = _forward_tiled(adj, emb_p, p_p, t_p, wd, bd, w1x, w1p, w1t,
                                 b1, w2p, b2p, n_pad=n_pad, hidden=hidden,
                                 gcn_hidden=gcn_hidden, c_pad=c_pad, tm=tm, tk=tk)

    return out_pad[:n, :n_classes]


def init_params(key, hidden_size, gcn_hidden, n_classes):
    ks = jax.random.split(key, 6)
    scale = 0.05
    return {
        "wd": scale * jax.random.normal(ks[0], (hidden_size, hidden_size), jnp.float32),
        "bd": scale * jax.random.normal(ks[1], (hidden_size,), jnp.float32),
        "w1": scale * jax.random.normal(ks[2], (hidden_size + 2, gcn_hidden), jnp.float32),
        "b1": scale * jax.random.normal(ks[3], (gcn_hidden,), jnp.float32),
        "w2": scale * jax.random.normal(ks[4], (gcn_hidden, n_classes), jnp.float32),
        "b2": scale * jax.random.normal(ks[5], (n_classes,), jnp.float32),
    }


def reference_forward(embedding, p_num, text_len, edge_index, edge_weight, params):
    """Pure-JAX f32 reference (PyG semantics, dropout off)."""
    n = embedding.shape[0]
    A = gcn_norm_dense(edge_index, edge_weight, n, n, improved=True)
    h = jnp.tanh(embedding @ params["wd"] + params["bd"])
    x = jnp.concatenate([h, p_num, text_len], axis=1)
    g1 = jnp.maximum(A @ (x @ params["w1"]) + params["b1"], 0.0)
    return A @ (g1 @ params["w2"]) + params["b2"]


def _make_inputs(key, n, hidden):
    k_emb, k_p, k_t, k_w = jax.random.split(key, 4)
    embedding = jax.random.normal(k_emb, (n, hidden), jnp.float32)
    p_num = jax.random.uniform(k_p, (n, 1), jnp.float32)
    text_len = jax.random.uniform(k_t, (n, 1), jnp.float32)
    # Deterministic ring graph (bidirectional edges).
    src = jnp.arange(n, dtype=jnp.int32)
    dst = (src + 1) % n
    edge_index = jnp.stack(
        [jnp.concatenate([src, dst]), jnp.concatenate([dst, src])], axis=0)
    edge_weight = jax.random.uniform(k_w, (2 * n,), jnp.float32) + 0.5
    return embedding, p_num, text_len, edge_index, edge_weight


if __name__ == "__main__":
    # Small synthetic shapes: hidden_size=32, 5 classes, conv1 width 128
    # (as in the module definition).
    HIDDEN, GCN_HIDDEN, N_CLASSES = 32, 128, 5

    key = jax.random.PRNGKey(0)
    k_in1, k_in2, k_params = jax.random.split(key, 3)
    params = init_params(k_params, HIDDEN, GCN_HIDDEN, N_CLASSES)

    fwd = jax.jit(bert_gcn_forward)

    # Case 1 (N=8)  -> fused single-kernel path (n_pad = 128).
    # Case 2 (N=300)-> tiled 3-kernel path (n_pad = 512, grid (2, 2)).
    for k_in, n in ((k_in1, 8), (k_in2, 300)):
        emb, p_num, text_len, edge_index, edge_weight = _make_inputs(k_in, n, HIDDEN)
        out = fwd(emb, p_num, text_len, edge_index, edge_weight, params)
        jax.block_until_ready(out)
        assert out.shape == (n, N_CLASSES)

        # Numerical sanity check against f32 reference (bf16 MXU tolerance).
        ref = reference_forward(emb, p_num, text_len, edge_index, edge_weight, params)
        assert jnp.allclose(out, ref, atol=1e-1, rtol=1e-1), f"mismatch vs reference (n={n})"

    print("KERNEL_OK")
</pallas_src>

<mosaic_0001>
module attributes {stable_mosaic.version = 11 : i64} {
  func.func private @main(%arg0: i32) attributes {dimension_semantics = [#tpu.dimension_semantics<core_parallel>], iteration_bounds = array<i64: 2>, tpu.core_type = #tpu.core_type<sc_scalar_subcore>, window_params = []} {
    return
  }
}

module attributes {stable_mosaic.version = 11 : i64} {
  func.func private @main(%arg0: i32) attributes {dimension_semantics = [#tpu.dimension_semantics<core_parallel>], iteration_bounds = array<i64: 2>, tpu.core_type = #tpu.core_type<sc_scalar_subcore>, window_params = []} {
    return
  }
}

module attributes {stable_mosaic.version = 11 : i64} {
  func.func @fused_kernel(%arg0: i32, %arg1: memref<128x128xbf16, #tpu.memory_space<vmem>>, %arg2: memref<128x32xbf16, #tpu.memory_space<vmem>>, %arg3: memref<128x1xf32, #tpu.memory_space<vmem>>, %arg4: memref<128x1xf32, #tpu.memory_space<vmem>>, %arg5: memref<32x32xbf16, #tpu.memory_space<vmem>>, %arg6: memref<1x32xf32, #tpu.memory_space<vmem>>, %arg7: memref<32x128xbf16, #tpu.memory_space<vmem>>, %arg8: memref<1x128xf32, #tpu.memory_space<vmem>>, %arg9: memref<1x128xf32, #tpu.memory_space<vmem>>, %arg10: memref<1x128xf32, #tpu.memory_space<vmem>>, %arg11: memref<128x128xbf16, #tpu.memory_space<vmem>>, %arg12: memref<1x128xf32, #tpu.memory_space<vmem>>, %arg13: memref<128x128xf32, #tpu.memory_space<vmem>>) attributes {dimension_semantics = [#tpu.dimension_semantics<arbitrary>], iteration_bounds = array<i64: 1>, scalar_prefetch = 0 : i64, scratch_operands = 0 : i64, tpu.core_type = #tpu.core_type<tc>, window_params = [{pipeline_mode = #tpu.pipeline_mode<synchronous>, transform_indices = @transform_0, window_bounds = array<i64: 128, 128>}, {pipeline_mode = #tpu.pipeline_mode<synchronous>, transform_indices = @transform_1, window_bounds = array<i64: 128, 32>}, {pipeline_mode = #tpu.pipeline_mode<synchronous>, transform_indices = @transform_2, window_bounds = array<i64: 128, 1>}, {pipeline_mode = #tpu.pipeline_mode<synchronous>, transform_indices = @transform_3, window_bounds = array<i64: 128, 1>}, {pipeline_mode = #tpu.pipeline_mode<synchronous>, transform_indices = @transform_4, window_bounds = array<i64: 32, 32>}, {pipeline_mode = #tpu.pipeline_mode<synchronous>, transform_indices = @transform_5, window_bounds = array<i64: 1, 32>}, {pipeline_mode = #tpu.pipeline_mode<synchronous>, transform_indices = @transform_6, window_bounds = array<i64: 32, 128>}, {pipeline_mode = #tpu.pipeline_mode<synchronous>, transform_indices = @transform_7, window_bounds = array<i64: 1, 128>}, {pipeline_mode = #tpu.pipeline_mode<synchronous>, transform_indices = @transform_8, window_bounds = array<i64: 1, 128>}, {pipeline_mode = #tpu.pipeline_mode<synchronous>, transform_indices = @transform_9, window_bounds = array<i64: 1, 128>}, {pipeline_mode = #tpu.pipeline_mode<synchronous>, transform_indices = @transform_10, window_bounds = array<i64: 128, 128>}, {pipeline_mode = #tpu.pipeline_mode<synchronous>, transform_indices = @transform_11, window_bounds = array<i64: 1, 128>}, {pipeline_mode = #tpu.pipeline_mode<synchronous>, transform_indices = @transform_12, window_bounds = array<i64: 128, 128>}]} {
    %c0 = arith.constant 0 : index
    %c0_0 = arith.constant 0 : index
    %0 = vector.load %arg2[%c0, %c0_0] : memref<128x32xbf16, #tpu.memory_space<vmem>>, vector<128x32xbf16>
    %c0_1 = arith.constant 0 : index
    %c0_2 = arith.constant 0 : index
    %1 = vector.load %arg5[%c0_1, %c0_2] : memref<32x32xbf16, #tpu.memory_space<vmem>>, vector<32x32xbf16>
    %cst = arith.constant dense<0.000000e+00> : vector<128x32xf32>
    %2 = tpu.matmul %0, %1, %cst {dimension_numbers = #tpu.dot_dimension_numbers<[1], [0], [0], [1], [0, 0, 1, 1], [], []>} : vector<128x32xbf16>, vector<32x32xbf16>, vector<128x32xf32> -> vector<128x32xf32>
    %c0_3 = arith.constant 0 : index
    %c0_4 = arith.constant 0 : index
    %3 = vector.load %arg6[%c0_3, %c0_4] : memref<1x32xf32, #tpu.memory_space<vmem>>, vector<1x32xf32>
    %4 = vector.broadcast %3 : vector<1x32xf32> to vector<128x32xf32>
    %5 = arith.addf %2, %4 : vector<128x32xf32>
    %6 = math.tanh %5 : vector<128x32xf32>
    %7 = arith.truncf %6 : vector<128x32xf32> to vector<128x32xbf16>
    %c0_5 = arith.constant 0 : index
    %c0_6 = arith.constant 0 : index
    %8 = vector.load %arg7[%c0_5, %c0_6] : memref<32x128xbf16, #tpu.memory_space<vmem>>, vector<32x128xbf16>
    %cst_7 = arith.constant dense<0.000000e+00> : vector<128x128xf32>
    %9 = tpu.matmul %7, %8, %cst_7 {dimension_numbers = #tpu.dot_dimension_numbers<[1], [0], [0], [1], [0, 0, 1, 1], [], []>} : vector<128x32xbf16>, vector<32x128xbf16>, vector<128x128xf32> -> vector<128x128xf32>
    %c0_8 = arith.constant 0 : index
    %c0_9 = arith.constant 0 : index
    %10 = vector.load %arg3[%c0_8, %c0_9] : memref<128x1xf32, #tpu.memory_space<vmem>>, vector<128x1xf32>
    %c0_10 = arith.constant 0 : index
    %c0_11 = arith.constant 0 : index
    %11 = vector.load %arg8[%c0_10, %c0_11] : memref<1x128xf32, #tpu.memory_space<vmem>>, vector<1x128xf32>
    %12 = vector.broadcast %10 : vector<128x1xf32> to vector<128x128xf32>
    %13 = vector.broadcast %11 : vector<1x128xf32> to vector<128x128xf32>
    %14 = arith.mulf %12, %13 : vector<128x128xf32>
    %15 = arith.addf %9, %14 : vector<128x128xf32>
    %c0_12 = arith.constant 0 : index
    %c0_13 = arith.constant 0 : index
    %16 = vector.load %arg4[%c0_12, %c0_13] : memref<128x1xf32, #tpu.memory_space<vmem>>, vector<128x1xf32>
    %c0_14 = arith.constant 0 : index
    %c0_15 = arith.constant 0 : index
    %17 = vector.load %arg9[%c0_14, %c0_15] : memref<1x128xf32, #tpu.memory_space<vmem>>, vector<1x128xf32>
    %18 = vector.broadcast %16 : vector<128x1xf32> to vector<128x128xf32>
    %19 = vector.broadcast %17 : vector<1x128xf32> to vector<128x128xf32>
    %20 = arith.mulf %18, %19 : vector<128x128xf32>
    %21 = arith.addf %15, %20 : vector<128x128xf32>
    %c0_16 = arith.constant 0 : index
    %c0_17 = arith.constant 0 : index
    %22 = vector.load %arg1[%c0_16, %c0_17] : memref<128x128xbf16, #tpu.memory_space<vmem>>, vector<128x128xbf16>
    %23 = arith.truncf %21 : vector<128x128xf32> to vector<128x128xbf16>
    %cst_18 = arith.constant dense<0.000000e+00> : vector<128x128xf32>
    %24 = tpu.matmul %22, %23, %cst_18 {dimension_numbers = #tpu.dot_dimension_numbers<[1], [0], [0], [1], [0, 0, 1, 1], [], []>} : vector<128x128xbf16>, vector<128x128xbf16>, vector<128x128xf32> -> vector<128x128xf32>
    %c0_19 = arith.constant 0 : index
    %c0_20 = arith.constant 0 : index
    %25 = vector.load %arg10[%c0_19, %c0_20] : memref<1x128xf32, #tpu.memory_space<vmem>>, vector<1x128xf32>
    %26 = vector.broadcast %25 : vector<1x128xf32> to vector<128x128xf32>
    %27 = arith.addf %24, %26 : vector<128x128xf32>
    %cst_21 = arith.constant 0.000000e+00 : f32
    %28 = vector.broadcast %cst_21 : f32 to vector<128x128xf32>
    %29 = arith.maximumf %27, %28 : vector<128x128xf32>
    %30 = arith.truncf %29 : vector<128x128xf32> to vector<128x128xbf16>
    %c0_22 = arith.constant 0 : index
    %c0_23 = arith.constant 0 : index
    %31 = vector.load %arg11[%c0_22, %c0_23] : memref<128x128xbf16, #tpu.memory_space<vmem>>, vector<128x128xbf16>
    %cst_24 = arith.constant dense<0.000000e+00> : vector<128x128xf32>
    %32 = tpu.matmul %30, %31, %cst_24 {dimension_numbers = #tpu.dot_dimension_numbers<[1], [0], [0], [1], [0, 0, 1, 1], [], []>} : vector<128x128xbf16>, vector<128x128xbf16>, vector<128x128xf32> -> vector<128x128xf32>
    %33 = arith.truncf %32 : vector<128x128xf32> to vector<128x128xbf16>
    %cst_25 = arith.constant dense<0.000000e+00> : vector<128x128xf32>
    %34 = tpu.matmul %22, %33, %cst_25 {dimension_numbers = #tpu.dot_dimension_numbers<[1], [0], [0], [1], [0, 0, 1, 1], [], []>} : vector<128x128xbf16>, vector<128x128xbf16>, vector<128x128xf32> -> vector<128x128xf32>
    %c0_26 = arith.constant 0 : index
    %c0_27 = arith.constant 0 : index
    %35 = vector.load %arg12[%c0_26, %c0_27] : memref<1x128xf32, #tpu.memory_space<vmem>>, vector<1x128xf32>
    %36 = vector.broadcast %35 : vector<1x128xf32> to vector<128x128xf32>
    %37 = arith.addf %34, %36 : vector<128x128xf32>
    %c0_28 = arith.constant 0 : index
    %c0_29 = arith.constant 0 : index
    %38 = vector.load %arg13[%c0_28, %c0_29] : memref<128x128xf32, #tpu.memory_space<vmem>>, vector<128x128xf32>
    tpu.vector_store %arg13[%c0_28, %c0_29], %37 {strides = array<i32>} : memref<128x128xf32, #tpu.memory_space<vmem>>, vector<128x128xf32>,
    return
  }
  func.func @transform_0(%arg0: i32) -> (i32, i32) {
    %c0_i32 = arith.constant 0 : i32
    %c0_i32_0 = arith.constant 0 : i32
    %c0_i32_1 = arith.constant 0 : i32
    return %c0_i32, %c0_i32_0 : i32, i32
  }
  func.func @transform_1(%arg0: i32) -> (i32, i32) {
    %c0_i32 = arith.constant 0 : i32
    %c0_i32_0 = arith.constant 0 : i32
    %c0_i32_1 = arith.constant 0 : i32
    return %c0_i32, %c0_i32_0 : i32, i32
  }
  func.func @transform_2(%arg0: i32) -> (i32, i32) {
    %c0_i32 = arith.constant 0 : i32
    %c0_i32_0 = arith.constant 0 : i32
    %c0_i32_1 = arith.constant 0 : i32
    return %c0_i32, %c0_i32_0 : i32, i32
  }
  func.func @transform_3(%arg0: i32) -> (i32, i32) {
    %c0_i32 = arith.constant 0 : i32
    %c0_i32_0 = arith.constant 0 : i32
    %c0_i32_1 = arith.constant 0 : i32
    return %c0_i32, %c0_i32_0 : i32, i32
  }
  func.func @transform_4(%arg0: i32) -> (i32, i32) {
    %c0_i32 = arith.constant 0 : i32
    %c0_i32_0 = arith.constant 0 : i32
    %c0_i32_1 = arith.constant 0 : i32
    return %c0_i32, %c0_i32_0 : i32, i32
  }
  func.func @transform_5(%arg0: i32) -> (i32, i32) {
    %c0_i32 = arith.constant 0 : i32
    %c0_i32_0 = arith.constant 0 : i32
    %c0_i32_1 = arith.constant 0 : i32
    return %c0_i32, %c0_i32_0 : i32, i32
  }
  func.func @transform_6(%arg0: i32) -> (i32, i32) {
    %c0_i32 = arith.constant 0 : i32
    %c0_i32_0 = arith.constant 0 : i32
    %c0_i32_1 = arith.constant 0 : i32
    return %c0_i32, %c0_i32_0 : i32, i32
  }
  func.func @transform_7(%arg0: i32) -> (i32, i32) {
    %c0_i32 = arith.constant 0 : i32
    %c0_i32_0 = arith.constant 0 : i32
    %c0_i32_1 = arith.constant 0 : i32
    return %c0_i32, %c0_i32_0 : i32, i32
  }
  func.func @transform_8(%arg0: i32) -> (i32, i32) {
    %c0_i32 = arith.constant 0 : i32
    %c0_i32_0 = arith.constant 0 : i32
    %c0_i32_1 = arith.constant 0 : i32
    return %c0_i32, %c0_i32_0 : i32, i32
  }
  func.func @transform_9(%arg0: i32) -> (i32, i32) {
    %c0_i32 = arith.constant 0 : i32
    %c0_i32_0 = arith.constant 0 : i32
    %c0_i32_1 = arith.constant 0 : i32
    return %c0_i32, %c0_i32_0 : i32, i32
  }
  func.func @transform_10(%arg0: i32) -> (i32, i32) {
    %c0_i32 = arith.constant 0 : i32
    %c0_i32_0 = arith.constant 0 : i32
    %c0_i32_1 = arith.constant 0 : i32
    return %c0_i32, %c0_i32_0 : i32, i32
  }
  func.func @transform_11(%arg0: i32) -> (i32, i32) {
    %c0_i32 = arith.constant 0 : i32
    %c0_i32_0 = arith.constant 0 : i32
    %c0_i32_1 = arith.constant 0 : i32
    return %c0_i32, %c0_i32_0 : i32, i32
  }
  func.func @transform_12(%arg0: i32) -> (i32, i32) {
    %c0_i32 = arith.constant 0 : i32
    %c0_i32_0 = arith.constant 0 : i32
    %c0_i32_1 = arith.constant 0 : i32
    return %c0_i32, %c0_i32_0 : i32, i32
  }
}

</mosaic_0001>

<llo_original>
// kernel: bert_gcn_forward.1
$region0: #{bert_gcn_forward.1}
  #allocation0 [shape = 'u32[]', space=smem, size = 0x4, offset = 0x4, fixed_abs, tag = 'smem constant byte address 0x4 - core index']
  #allocation1 [shape = 'u32[144,128]{1,0:T(1,128)}', space=vmem, size = 0x12000, scoped, tag = 'internal scratch']
  %s0 = inlined_call_operand.vmem [shape: bf16[128,128], index: 0, kind: input, shape index: {}]
  %s1 = inlined_call_operand.vmem [shape: bf16[128,32], index: 1, kind: input, shape index: {}]
  %s2 = inlined_call_operand.vmem [shape: f32[128,1], index: 2, kind: input, shape index: {}]
  %s3 = inlined_call_operand.vmem [shape: f32[128,1], index: 3, kind: input, shape index: {}]
  %s4 = inlined_call_operand.vmem [shape: bf16[32,32], index: 4, kind: input, shape index: {}]
  %s5 = inlined_call_operand.vmem [shape: f32[1,32], index: 5, kind: input, shape index: {}]
  %s6 = inlined_call_operand.vmem [shape: bf16[32,128], index: 6, kind: input, shape index: {}]
  %s7 = inlined_call_operand.vmem [shape: f32[1,128], index: 7, kind: input, shape index: {}]
  %s8 = inlined_call_operand.vmem [shape: f32[1,128], index: 8, kind: input, shape index: {}]
  %s9 = inlined_call_operand.vmem [shape: f32[1,128], index: 9, kind: input, shape index: {}]
  %s10 = inlined_call_operand.vmem [shape: bf16[128,128], index: 10, kind: input, shape index: {}]
  %s11 = inlined_call_operand.vmem [shape: f32[1,128], index: 11, kind: input, shape index: {}]
  %s12 = inlined_call_operand.vmem [shape: f32[128,128], index: 12, kind: output, shape index: {}]
  %s13 = sld [smem:[#allocation0]]
  $region58: #{bert_gcn_forward.1} parent=0
    _
  %s15 = ssub.s32 1, %s13
  %s16 = scalar_select 0, %s15, %s13
  // Predicated region
  $region2: #{bert_gcn_forward.1} parent=0 // pred_check
    _
  $region3: #{bert_gcn_forward.1} parent=0 // pred_check_branch
    %18 = sbr.rel (0) target = $region5
  $region4: #{bert_gcn_forward.1} parent=0 // pred_region
    _
  $region5: #{bert_gcn_forward.1} parent=0 // pred_fallthru
    _
  // Predicated region
  $region6: #{bert_gcn_forward.1} parent=0 // pred_check
    _
  $region7: #{bert_gcn_forward.1} parent=0 // pred_check_branch
    %20 = sbr.rel (0) target = $region9
  $region8: #{bert_gcn_forward.1} parent=0 // pred_region
    _
  $region9: #{bert_gcn_forward.1} parent=0 // pred_fallthru
    _
  // Predicated region
  $region10: #{bert_gcn_forward.1} parent=0 // pred_check
    _
  $region11: #{bert_gcn_forward.1} parent=0 // pred_check_branch
    %22 = sbr.rel (0) target = $region13
  $region12: #{bert_gcn_forward.1} parent=0 // pred_region
    _
  $region13: #{bert_gcn_forward.1} parent=0 // pred_fallthru
    _
  // Predicated region
  $region14: #{bert_gcn_forward.1} parent=0 // pred_check
    _
  $region15: #{bert_gcn_forward.1} parent=0 // pred_check_branch
    %24 = sbr.rel (0) target = $region17
  $region16: #{bert_gcn_forward.1} parent=0 // pred_region
    _
  $region17: #{bert_gcn_forward.1} parent=0 // pred_fallthru
    _
  // Predicated region
  $region18: #{bert_gcn_forward.1} parent=0 // pred_check
    _
  $region19: #{bert_gcn_forward.1} parent=0 // pred_check_branch
    %26 = sbr.rel (0) target = $region21
  $region20: #{bert_gcn_forward.1} parent=0 // pred_region
    _
  $region21: #{bert_gcn_forward.1} parent=0 // pred_fallthru
    _
  // Predicated region
  $region22: #{bert_gcn_forward.1} parent=0 // pred_check
    _
  $region23: #{bert_gcn_forward.1} parent=0 // pred_check_branch
    %28 = sbr.rel (0) target = $region25
  $region24: #{bert_gcn_forward.1} parent=0 // pred_region
    _
  $region25: #{bert_gcn_forward.1} parent=0 // pred_fallthru
    _
  // Predicated region
  $region26: #{bert_gcn_forward.1} parent=0 // pred_check
    _
  $region27: #{bert_gcn_forward.1} parent=0 // pred_check_branch
    %30 = sbr.rel (0) target = $region29
  $region28: #{bert_gcn_forward.1} parent=0 // pred_region
    _
  $region29: #{bert_gcn_forward.1} parent=0 // pred_fallthru
    _
  // Predicated region
  $region30: #{bert_gcn_forward.1} parent=0 // pred_check
    _
  $region31: #{bert_gcn_forward.1} parent=0 // pred_check_branch
    %32 = sbr.rel (0) target = $region33
  $region32: #{bert_gcn_forward.1} parent=0 // pred_region
    _
  $region33: #{bert_gcn_forward.1} parent=0 // pred_fallthru
    _
  // Predicated region
  $region34: #{bert_gcn_forward.1} parent=0 // pred_check
    _
  $region35: #{bert_gcn_forward.1} parent=0 // pred_check_branch
    %34 = sbr.rel (0) target = $region37
  $region36: #{bert_gcn_forward.1} parent=0 // pred_region
    _
  $region37: #{bert_gcn_forward.1} parent=0 // pred_fallthru
    _
  // Predicated region
  $region38: #{bert_gcn_forward.1} parent=0 // pred_check
    _
  $region39: #{bert_gcn_forward.1} parent=0 // pred_check_branch
    %36 = sbr.rel (0) target = $region41
  $region40: #{bert_gcn_forward.1} parent=0 // pred_region
    _
  $region41: #{bert_gcn_forward.1} parent=0 // pred_fallthru
    _
  // Predicated region
  $region42: #{bert_gcn_forward.1} parent=0 // pred_check
    _
  $region43: #{bert_gcn_forward.1} parent=0 // pred_check_branch
    %38 = sbr.rel (0) target = $region45
  $region44: #{bert_gcn_forward.1} parent=0 // pred_region
    _
  $region45: #{bert_gcn_forward.1} parent=0 // pred_fallthru
    _
  // Predicated region
  $region46: #{bert_gcn_forward.1} parent=0 // pred_check
    _
  $region47: #{bert_gcn_forward.1} parent=0 // pred_check_branch
    %40 = sbr.rel (0) target = $region49
  $region48: #{bert_gcn_forward.1} parent=0 // pred_region
    _
  $region49: #{bert_gcn_forward.1} parent=0 // pred_fallthru
    _
  %v42 = vld [vmem:[%s1] sm:$0xf]
  %v43 = vld [vmem:[%s1 + $0x4] sm:$0xf]
  %v44 = vld [vmem:[%s1 + $0x8] sm:$0xf]
  %v45 = vld [vmem:[%s1 + $0xc] sm:$0xf]
  %v46 = vld [vmem:[%s1 + $0x10] sm:$0xf]
  %v47 = vld [vmem:[%s1 + $0x14] sm:$0xf]
  %v48 = vld [vmem:[%s1 + $0x18] sm:$0xf]
  %v49 = vld [vmem:[%s1 + $0x1c] sm:$0xf]
  %v50 = vld [vmem:[%s1 + $0x20] sm:$0xf]
  %v51 = vld [vmem:[%s1 + $0x24] sm:$0xf]
  %v52 = vld [vmem:[%s1 + $0x28] sm:$0xf]
  %v53 = vld [vmem:[%s1 + $0x2c] sm:$0xf]
  %v54 = vld [vmem:[%s1 + $0x30] sm:$0xf]
  %v55 = vld [vmem:[%s1 + $0x34] sm:$0xf]
  %v56 = vld [vmem:[%s1 + $0x38] sm:$0xf]
  %v57 = vld [vmem:[%s1 + $0x3c] sm:$0xf]
  %v58 = vld [vmem:[%s4] sm:$0xf]
  %v59 = vld [vmem:[%s4 + $0x4] sm:$0xf]
  %v60 = vld [vmem:[%s4 + $0x8] sm:$0xf]
  %v61 = vld [vmem:[%s4 + $0xc] sm:$0xf]
  %v62 = vld [vmem:[%s5] sm:$0x1]
  %v64 = vlaneseq
  %v65 = vshrl.u32 %v64, 7
  %v66 = vsub.s32 0, %v65
  %v67 = vrot.slane %v62, %v66
  %v85 = vunpack.c.l.b16 %v42
  %v86 = vunpack.c.l.b16 %v43
  %v87 = vunpack.c.l.b16 %v44
  %v88 = vunpack.c.l.b16 %v45
  %v89 = vunpack.c.l.b16 %v46
  %v90 = vunpack.c.l.b16 %v47
  %v91 = vunpack.c.l.b16 %v48
  %v92 = vunpack.c.l.b16 %v49
  %v93 = vunpack.c.l.b16 %v50
  %v94 = vunpack.c.l.b16 %v51
  %v95 = vunpack.c.l.b16 %v52
  %v96 = vunpack.c.l.b16 %v53
  %v97 = vunpack.c.l.b16 %v54
  %v98 = vunpack.c.l.b16 %v55
  %v99 = vunpack.c.l.b16 %v56
  %v100 = vunpack.c.l.b16 %v57
  %v101 = vpack.c.b16 %v86, %v85
  %v102 = vpack.c.b16 %v88, %v87
  %v103 = vpack.c.b16 %v90, %v89
  %v104 = vpack.c.b16 %v92, %v91
  %v105 = vpack.c.b16 %v94, %v93
  %v106 = vpack.c.b16 %v96, %v95
  %v107 = vpack.c.b16 %v98, %v97
  %v108 = vpack.c.b16 %v100, %v99
  %v113 = vunpack.c.l.b16 %v58
  %v114 = vunpack.c.l.b16 %v59
  %v115 = vunpack.c.l.b16 %v60
  %v116 = vunpack.c.l.b16 %v61
  %v117 = vpack.c.b16 %v114, %v113
  %v118 = vpack.c.b16 %v116, %v115
  %vm121 = vcmask 261120
  %v123 = vsel %vm121, %v101, 0
  %v126 = vsel %vm121, %v102, 0
  %v129 = vsel %vm121, %v103, 0
  %v132 = vsel %vm121, %v104, 0
  %v135 = vsel %vm121, %v105, 0
  %v138 = vsel %vm121, %v106, 0
  %v141 = vsel %vm121, %v107, 0
  %v144 = vsel %vm121, %v108, 0
  %146 = vmatprep.subr.bf16.mxu0 0
  %147 = vmatpush1.bf16.msra.mxu0 %v117
  %148 = vmatprep.subr.bf16.mxu0 0
  %149 = vmatpush1.bf16.msra.mxu0 %v118
  %150 = vmatprep.subr.bf16.mxu0 0
  %151 = vmatpush1.bf16.msra.mxu0 0
  %152 = vmatprep.subr.bf16.mxu0 0
  %153 = vmatpush1.bf16.msra.mxu0 0
  %154 = vmatprep.subr.bf16.mxu0 0
  %155 = vmatpush1.bf16.msra.mxu0 0
  %156 = vmatprep.subr.bf16.mxu0 0
  %157 = vmatpush1.bf16.msra.mxu0 0
  %158 = vmatprep.subr.bf16.mxu0 0
  %159 = vmatpush1.bf16.msra.mxu0 0
  %160 = vmatprep.subr.bf16.mxu0 0
  %161 = vmatpush1.bf16.msra.mxu0 0
  %162 = vmatprep.subr.bf16.mxu0 0
  %163 = vmatpush1.bf16.msra.mxu0 0
  %164 = vmatprep.subr.bf16.mxu0 0
  %165 = vmatpush1.bf16.msra.mxu0 0
  %166 = vmatprep.subr.bf16.mxu0 0
  %167 = vmatpush1.bf16.msra.mxu0 0
  %168 = vmatprep.subr.bf16.mxu0 0
  %169 = vmatpush1.bf16.msra.mxu0 0
  %170 = vmatprep.subr.bf16.mxu0 0
  %171 = vmatpush1.bf16.msra.mxu0 0
  %172 = vmatprep.subr.bf16.mxu0 0
  %173 = vmatpush1.bf16.msra.mxu0 0
  %174 = vmatprep.subr.bf16.mxu0 0
  %175 = vmatpush1.bf16.msra.mxu0 0
  %176 = vmatprep.subr.bf16.mxu0 0
  %177 = vmatpush1.bf16.msra.mxu0 0
  %178 = vmatprep.mubr.bf16.mxu0 0
  %179 = vmatmul.mubr.bf16.gmra.mrb[0].mxu0 %v123
  %v180 = vpop.f32.mrb[0].mxu0
  %v181 = vadd.f32 %v67, %v180
  %v182 = vpop.f32.mrb[0].mxu0
  %v183 = vpop.f32.mrb[0].mxu0
  %v184 = vadd.f32 %v67, %v183
  %v185 = vpop.f32.mrb[0].mxu0
  %186 = vmatprep.mubr.bf16.mxu0 0
  %187 = vmatmul.mubr.bf16.gmra.mrb[0].mxu0 %v126
  %v188 = vpop.f32.mrb[0].mxu0
  %v189 = vadd.f32 %v67, %v188
  %v190 = vpop.f32.mrb[0].mxu0
  %v191 = vpop.f32.mrb[0].mxu0
  %v192 = vadd.f32 %v67, %v191
  %v193 = vpop.f32.mrb[0].mxu0
  %194 = vmatprep.mubr.bf16.mxu0 0
  %195 = vmatmul.mubr.bf16.gmra.mrb[0].mxu0 %v129
  %v196 = vpop.f32.mrb[0].mxu0
  %v197 = vadd.f32 %v67, %v196
  %v198 = vpop.f32.mrb[0].mxu0
  %v199 = vpop.f32.mrb[0].mxu0
  %v200 = vadd.f32 %v67, %v199
  %v201 = vpop.f32.mrb[0].mxu0
  %202 = vmatprep.mubr.bf16.mxu0 0
  %203 = vmatmul.mubr.bf16.gmra.mrb[0].mxu0 %v132
  %v204 = vpop.f32.mrb[0].mxu0
  %v205 = vadd.f32 %v67, %v204
  %v206 = vpop.f32.mrb[0].mxu0
  %v207 = vpop.f32.mrb[0].mxu0
  %v208 = vadd.f32 %v67, %v207
  %v209 = vpop.f32.mrb[0].mxu0
  %210 = vmatprep.mubr.bf16.mxu0 0
  %211 = vmatmul.mubr.bf16.gmra.mrb[0].mxu0 %v135
  %v212 = vpop.f32.mrb[0].mxu0
  %v213 = vadd.f32 %v67, %v212
  %v214 = vpop.f32.mrb[0].mxu0
  %v215 = vpop.f32.mrb[0].mxu0
  %v216 = vadd.f32 %v67, %v215
  %v217 = vpop.f32.mrb[0].mxu0
  %218 = vmatprep.mubr.bf16.mxu0 0
  %219 = vmatmul.mubr.bf16.gmra.mrb[0].mxu0 %v138
  %v220 = vpop.f32.mrb[0].mxu0
  %v221 = vadd.f32 %v67, %v220
  %v222 = vpop.f32.mrb[0].mxu0
  %v223 = vpop.f32.mrb[0].mxu0
  %v224 = vadd.f32 %v67, %v223
  %v225 = vpop.f32.mrb[0].mxu0
  %226 = vmatprep.mubr.bf16.mxu0 0
  %227 = vmatmul.mubr.bf16.gmra.mrb[0].mxu0 %v141
  %v228 = vpop.f32.mrb[0].mxu0
  %v229 = vadd.f32 %v67, %v228
  %v230 = vpop.f32.mrb[0].mxu0
  %v231 = vpop.f32.mrb[0].mxu0
  %v232 = vadd.f32 %v67, %v231
  %v233 = vpop.f32.mrb[0].mxu0
  %234 = vmatprep.mubr.bf16.mxu0 0
  %235 = vmatmul.mubr.bf16.gmra.mrb[0].mxu0 %v144
  %v236 = vpop.f32.mrb[0].mxu0
  %v237 = vadd.f32 %v67, %v236
  %v238 = vpop.f32.mrb[0].mxu0
  %v239 = vpop.f32.mrb[0].mxu0
  %v240 = vadd.f32 %v67, %v239
  %v241 = vpop.f32.mrb[0].mxu0
  %242 = vdwg.mxu0
  %v243 = vtanh.pop %v181
  %v244 = vtanh.pop %v184
  %v245 = vtanh.pop %v189
  %v246 = vtanh.pop %v192
  %v247 = vtanh.pop %v197
  %v248 = vtanh.pop %v200
  %v249 = vtanh.pop %v205
  %v250 = vtanh.pop %v208
  %v251 = vtanh.pop %v213
  %v252 = vtanh.pop %v216
  %v253 = vtanh.pop %v221
  %v254 = vtanh.pop %v224
  %v255 = vtanh.pop %v229
  %v256 = vtanh.pop %v232
  %v257 = vtanh.pop %v237
  %v258 = vtanh.pop %v240
  %v259 = vpack.c.bf16 %v244, %v243
  %v260 = vpack.c.bf16 %v246, %v245
  %v261 = vpack.c.bf16 %v248, %v247
  %v262 = vpack.c.bf16 %v250, %v249
  %v263 = vpack.c.bf16 %v252, %v251
  %v264 = vpack.c.bf16 %v254, %v253
  %v265 = vpack.c.bf16 %v256, %v255
  %v266 = vpack.c.bf16 %v258, %v257
  %v267 = vld [vmem:[%s6] sm:$0xf]
  %v268 = vld [vmem:[%s6 + $0x4] sm:$0xf]
  %v269 = vld [vmem:[%s6 + $0x8] sm:$0xf]
  %v270 = vld [vmem:[%s6 + $0xc] sm:$0xf]
  %v271 = vld [vmem:[%s2] sm:$0xff]
  %v272 = vld [vmem:[%s2 + $0x8] sm:$0xff]
  %v273 = vld [vmem:[%s2 + $0x10] sm:$0xff]
  %v274 = vld [vmem:[%s2 + $0x18] sm:$0xff]
  %v275 = vld [vmem:[%s2 + $0x20] sm:$0xff]
  %v276 = vld [vmem:[%s2 + $0x28] sm:$0xff]
  %v277 = vld [vmem:[%s2 + $0x30] sm:$0xff]
  %v278 = vld [vmem:[%s2 + $0x38] sm:$0xff]
  %v279 = vld [vmem:[%s2 + $0x40] sm:$0xff]
  %v280 = vld [vmem:[%s2 + $0x48] sm:$0xff]
  %v281 = vld [vmem:[%s2 + $0x50] sm:$0xff]
  %v282 = vld [vmem:[%s2 + $0x58] sm:$0xff]
  %v283 = vld [vmem:[%s2 + $0x60] sm:$0xff]
  %v284 = vld [vmem:[%s2 + $0x68] sm:$0xff]
  %v285 = vld [vmem:[%s2 + $0x70] sm:$0xff]
  %v286 = vld [vmem:[%s2 + $0x78] sm:$0xff]
  %v287 = vld [vmem:[%s7] sm:$0x1]
  %289 = vset.pattern.permute.xlu0 0
  %290 = vperm.xlu0 %289, %v271
  %v291 = vpop.permute.xlu0 %290
  %294 = vset.pattern.permute.xlu0 0
  %295 = vperm.xlu0 %294, %v272
  %v296 = vpop.permute.xlu0 %295
  %299 = vset.pattern.permute.xlu0 0
  %300 = vperm.xlu0 %299, %v273
  %v301 = vpop.permute.xlu0 %300
  %304 = vset.pattern.permute.xlu0 0
  %305 = vperm.xlu0 %304, %v274
  %v306 = vpop.permute.xlu0 %305
  %309 = vset.pattern.permute.xlu0 0
  %310 = vperm.xlu0 %309, %v275
  %v311 = vpop.permute.xlu0 %310
  %314 = vset.pattern.permute.xlu0 0
  %315 = vperm.xlu0 %314, %v276
  %v316 = vpop.permute.xlu0 %315
  %319 = vset.pattern.permute.xlu0 0
  %320 = vperm.xlu0 %319, %v277
  %v321 = vpop.permute.xlu0 %320
  %324 = vset.pattern.permute.xlu0 0
  %325 = vperm.xlu0 %324, %v278
  %v326 = vpop.permute.xlu0 %325
  %329 = vset.pattern.permute.xlu0 0
  %330 = vperm.xlu0 %329, %v279
  %v331 = vpop.permute.xlu0 %330
  %334 = vset.pattern.permute.xlu0 0
  %335 = vperm.xlu0 %334, %v280
  %v336 = vpop.permute.xlu0 %335
  %339 = vset.pattern.permute.xlu0 0
  %340 = vperm.xlu0 %339, %v281
  %v341 = vpop.permute.xlu0 %340
  %344 = vset.pattern.permute.xlu0 0
  %345 = vperm.xlu0 %344, %v282
  %v346 = vpop.permute.xlu0 %345
  %349 = vset.pattern.permute.xlu0 0
  %350 = vperm.xlu0 %349, %v283
  %v351 = vpop.permute.xlu0 %350
  %354 = vset.pattern.permute.xlu0 0
  %355 = vperm.xlu0 %354, %v284
  %v356 = vpop.permute.xlu0 %355
  %359 = vset.pattern.permute.xlu0 0
  %360 = vperm.xlu0 %359, %v285
  %v361 = vpop.permute.xlu0 %360
  %364 = vset.pattern.permute.xlu0 0
  %365 = vperm.xlu0 %364, %v286
  %v366 = vpop.permute.xlu0 %365
  %v369 = vlaneseq
  %v370 = vshrl.u32 %v369, 7
  %v371 = vsub.s32 0, %v370
  %v372 = vrot.slane %v287, %v371
  %v374 = vmul.f32 %v291, %v372
  %v375 = vmul.f32 %v296, %v372
  %v376 = vmul.f32 %v301, %v372
  %v377 = vmul.f32 %v306, %v372
  %v378 = vmul.f32 %v311, %v372
  %v379 = vmul.f32 %v316, %v372
  %v380 = vmul.f32 %v321, %v372
  %v381 = vmul.f32 %v326, %v372
  %v382 = vmul.f32 %v331, %v372
  %v383 = vmul.f32 %v336, %v372
  %v384 = vmul.f32 %v341, %v372
  %v385 = vmul.f32 %v346, %v372
  %v386 = vmul.f32 %v351, %v372
  %v387 = vmul.f32 %v356, %v372
  %v388 = vmul.f32 %v361, %v372
  %v389 = vmul.f32 %v366, %v372
  %v394 = vunpack.c.l.b16 %v267
  %v395 = vunpack.c.l.b16 %v268
  %v396 = vunpack.c.l.b16 %v269
  %v397 = vunpack.c.l.b16 %v270
  %v398 = vpack.c.b16 %v395, %v394
  %v399 = vpack.c.b16 %v397, %v396
  %v403 = vsel %vm121, %v259, 0
  %v406 = vsel %vm121, %v260, 0
  %v409 = vsel %vm121, %v261, 0
  %v412 = vsel %vm121, %v262, 0
  %v415 = vsel %vm121, %v263, 0
  %v418 = vsel %vm121, %v264, 0
  %v421 = vsel %vm121, %v265, 0
  %v424 = vsel %vm121, %v266, 0
  %426 = vmatprep.subr.bf16.mxu0 0
  %427 = vmatpush1.bf16.msra.mxu0 %v398
  %428 = vmatprep.subr.bf16.mxu0 0
  %429 = vmatpush1.bf16.msra.mxu0 %v399
  %430 = vmatprep.subr.bf16.mxu0 0
  %431 = vmatpush1.bf16.msra.mxu0 0
  %432 = vmatprep.subr.bf16.mxu0 0
  %433 = vmatpush1.bf16.msra.mxu0 0
  %434 = vmatprep.subr.bf16.mxu0 0
  %435 = vmatpush1.bf16.msra.mxu0 0
  %436 = vmatprep.subr.bf16.mxu0 0
  %437 = vmatpush1.bf16.msra.mxu0 0
  %438 = vmatprep.subr.bf16.mxu0 0
  %439 = vmatpush1.bf16.msra.mxu0 0
  %440 = vmatprep.subr.bf16.mxu0 0
  %441 = vmatpush1.bf16.msra.mxu0 0
  %442 = vmatprep.subr.bf16.mxu0 0
  %443 = vmatpush1.bf16.msra.mxu0 0
  %444 = vmatprep.subr.bf16.mxu0 0
  %445 = vmatpush1.bf16.msra.mxu0 0
  %446 = vmatprep.subr.bf16.mxu0 0
  %447 = vmatpush1.bf16.msra.mxu0 0
  %448 = vmatprep.subr.bf16.mxu0 0
  %449 = vmatpush1.bf16.msra.mxu0 0
  %450 = vmatprep.subr.bf16.mxu0 0
  %451 = vmatpush1.bf16.msra.mxu0 0
  %452 = vmatprep.subr.bf16.mxu0 0
  %453 = vmatpush1.bf16.msra.mxu0 0
  %454 = vmatprep.subr.bf16.mxu0 0
  %455 = vmatpush1.bf16.msra.mxu0 0
  %456 = vmatprep.subr.bf16.mxu0 0
  %457 = vmatpush1.bf16.msra.mxu0 0
  %458 = vmatprep.mubr.bf16.mxu0 0
  %459 = vmatmul.mubr.bf16.gmra.mrb[0].mxu0 %v403
  %v460 = vpop.f32.mrb[0].mxu0
  %v461 = vadd.f32 %v374, %v460
  %v462 = vpop.f32.mrb[0].mxu0
  %v463 = vpop.f32.mrb[0].mxu0
  %v464 = vadd.f32 %v375, %v463
  %v465 = vpop.f32.mrb[0].mxu0
  %466 = vmatprep.mubr.bf16.mxu0 0
  %467 = vmatmul.mubr.bf16.gmra.mrb[0].mxu0 %v406
  %v468 = vpop.f32.mrb[0].mxu0
  %v469 = vadd.f32 %v376, %v468
  %v470 = vpop.f32.mrb[0].mxu0
  %v471 = vpop.f32.mrb[0].mxu0
  %v472 = vadd.f32 %v377, %v471
  %v473 = vpop.f32.mrb[0].mxu0
  %474 = vmatprep.mubr.bf16.mxu0 0
  %475 = vmatmul.mubr.bf16.gmra.mrb[0].mxu0 %v409
  %v476 = vpop.f32.mrb[0].mxu0
  %v477 = vadd.f32 %v378, %v476
  %v478 = vpop.f32.mrb[0].mxu0
  %v479 = vpop.f32.mrb[0].mxu0
  %v480 = vadd.f32 %v379, %v479
  %v481 = vpop.f32.mrb[0].mxu0
  %482 = vmatprep.mubr.bf16.mxu0 0
  %483 = vmatmul.mubr.bf16.gmra.mrb[0].mxu0 %v412
  %v484 = vpop.f32.mrb[0].mxu0
  %v485 = vadd.f32 %v380, %v484
  %v486 = vpop.f32.mrb[0].mxu0
  %v487 = vpop.f32.mrb[0].mxu0
  %v488 = vadd.f32 %v381, %v487
  %v489 = vpop.f32.mrb[0].mxu0
  %490 = vmatprep.mubr.bf16.mxu0 0
  %491 = vmatmul.mubr.bf16.gmra.mrb[0].mxu0 %v415
  %v492 = vpop.f32.mrb[0].mxu0
  %v493 = vadd.f32 %v382, %v492
  %v494 = vpop.f32.mrb[0].mxu0
  %v495 = vpop.f32.mrb[0].mxu0
  %v496 = vadd.f32 %v383, %v495
  %v497 = vpop.f32.mrb[0].mxu0
  %498 = vmatprep.mubr.bf16.mxu0 0
  %499 = vmatmul.mubr.bf16.gmra.mrb[0].mxu0 %v418
  %v500 = vpop.f32.mrb[0].mxu0
  %v501 = vadd.f32 %v384, %v500
  %v502 = vpop.f32.mrb[0].mxu0
  %v503 = vpop.f32.mrb[0].mxu0
  %v504 = vadd.f32 %v385, %v503
  %v505 = vpop.f32.mrb[0].mxu0
  %506 = vmatprep.mubr.bf16.mxu0 0
  %507 = vmatmul.mubr.bf16.gmra.mrb[0].mxu0 %v421
  %v508 = vpop.f32.mrb[0].mxu0
  %v509 = vadd.f32 %v386, %v508
  %v510 = vpop.f32.mrb[0].mxu0
  %v511 = vpop.f32.mrb[0].mxu0
  %v512 = vadd.f32 %v387, %v511
  %v513 = vpop.f32.mrb[0].mxu0
  %514 = vmatprep.mubr.bf16.mxu0 0
  %515 = vmatmul.mubr.bf16.gmra.mrb[0].mxu0 %v424
  %v516 = vpop.f32.mrb[0].mxu0
  %v517 = vadd.f32 %v388, %v516
  %v518 = vpop.f32.mrb[0].mxu0
  %v519 = vpop.f32.mrb[0].mxu0
  %v520 = vadd.f32 %v389, %v519
  %v521 = vpop.f32.mrb[0].mxu0
  %522 = vdwg.mxu0
  %v523 = vld [vmem:[%s3] sm:$0xff]
  %v524 = vld [vmem:[%s3 + $0x8] sm:$0xff]
  %v525 = vld [vmem:[%s3 + $0x10] sm:$0xff]
  %v526 = vld [vmem:[%s3 + $0x18] sm:$0xff]
  %v527 = vld [vmem:[%s3 + $0x20] sm:$0xff]
  %v528 = vld [vmem:[%s3 + $0x28] sm:$0xff]
  %v529 = vld [vmem:[%s3 + $0x30] sm:$0xff]
  %v530 = vld [vmem:[%s3 + $0x38] sm:$0xff]
  %v531 = vld [vmem:[%s3 + $0x40] sm:$0xff]
  %v532 = vld [vmem:[%s3 + $0x48] sm:$0xff]
  %v533 = vld [vmem:[%s3 + $0x50] sm:$0xff]
  %v534 = vld [vmem:[%s3 + $0x58] sm:$0xff]
  %v535 = vld [vmem:[%s3 + $0x60] sm:$0xff]
  %v536 = vld [vmem:[%s3 + $0x68] sm:$0xff]
  %v537 = vld [vmem:[%s3 + $0x70] sm:$0xff]
  %v538 = vld [vmem:[%s3 + $0x78] sm:$0xff]
  %v539 = vld [vmem:[%s8] sm:$0x1]
  %541 = vset.pattern.permute.xlu0 0
  %542 = vperm.xlu0 %541, %v523
  %v543 = vpop.permute.xlu0 %542
  %546 = vset.pattern.permute.xlu0 0
  %547 = vperm.xlu0 %546, %v524
  %v548 = vpop.permute.xlu0 %547
  %551 = vset.pattern.permute.xlu0 0
  %552 = vperm.xlu0 %551, %v525
  %v553 = vpop.permute.xlu0 %552
  %556 = vset.pattern.permute.xlu0 0
  %557 = vperm.xlu0 %556, %v526
  %v558 = vpop.permute.xlu0 %557
  %561 = vset.pattern.permute.xlu0 0
  %562 = vperm.xlu0 %561, %v527
  %v563 = vpop.permute.xlu0 %562
  %566 = vset.pattern.permute.xlu0 0
  %567 = vperm.xlu0 %566, %v528
  %v568 = vpop.permute.xlu0 %567
  %571 = vset.pattern.permute.xlu0 0
  %572 = vperm.xlu0 %571, %v529
  %v573 = vpop.permute.xlu0 %572
  %576 = vset.pattern.permute.xlu0 0
  %577 = vperm.xlu0 %576, %v530
  %v578 = vpop.permute.xlu0 %577
  %581 = vset.pattern.permute.xlu0 0
  %582 = vperm.xlu0 %581, %v531
  %v583 = vpop.permute.xlu0 %582
  %586 = vset.pattern.permute.xlu0 0
  %587 = vperm.xlu0 %586, %v532
  %v588 = vpop.permute.xlu0 %587
  %591 = vset.pattern.permute.xlu0 0
  %592 = vperm.xlu0 %591, %v533
  %v593 = vpop.permute.xlu0 %592
  %596 = vset.pattern.permute.xlu0 0
  %597 = vperm.xlu0 %596, %v534
  %v598 = vpop.permute.xlu0 %597
  %601 = vset.pattern.permute.xlu0 0
  %602 = vperm.xlu0 %601, %v535
  %v603 = vpop.permute.xlu0 %602
  %606 = vset.pattern.permute.xlu0 0
  %607 = vperm.xlu0 %606, %v536
  %v608 = vpop.permute.xlu0 %607
  %611 = vset.pattern.permute.xlu0 0
  %612 = vperm.xlu0 %611, %v537
  %v613 = vpop.permute.xlu0 %612
  %616 = vset.pattern.permute.xlu0 0
  %617 = vperm.xlu0 %616, %v538
  %v618 = vpop.permute.xlu0 %617
  %v621 = vlaneseq
  %v622 = vshrl.u32 %v621, 7
  %v623 = vsub.s32 0, %v622
  %v624 = vrot.slane %v539, %v623
  %v626 = vmul.f32 %v543, %v624
  %v627 = vmul.f32 %v548, %v624
  %v628 = vmul.f32 %v553, %v624
  %v629 = vmul.f32 %v558, %v624
  %v630 = vmul.f32 %v563, %v624
  %v631 = vmul.f32 %v568, %v624
  %v632 = vmul.f32 %v573, %v624
  %v633 = vmul.f32 %v578, %v624
  %v634 = vmul.f32 %v583, %v624
  %v635 = vmul.f32 %v588, %v624
  %v636 = vmul.f32 %v593, %v624
  %v637 = vmul.f32 %v598, %v624
  %v638 = vmul.f32 %v603, %v624
  %v639 = vmul.f32 %v608, %v624
  %v640 = vmul.f32 %v613, %v624
  %v641 = vmul.f32 %v618, %v624
  %v642 = vadd.f32 %v461, %v626
  %v643 = vadd.f32 %v464, %v627
  %v644 = vadd.f32 %v469, %v628
  %v645 = vadd.f32 %v472, %v629
  %v646 = vadd.f32 %v477, %v630
  %v647 = vadd.f32 %v480, %v631
  %v648 = vadd.f32 %v485, %v632
  %v649 = vadd.f32 %v488, %v633
  %v650 = vadd.f32 %v493, %v634
  %v651 = vadd.f32 %v496, %v635
  %v652 = vadd.f32 %v501, %v636
  %v653 = vadd.f32 %v504, %v637
  %v654 = vadd.f32 %v509, %v638
  %v655 = vadd.f32 %v512, %v639
  %v656 = vadd.f32 %v517, %v640
  %v657 = vadd.f32 %v520, %v641
  %v658 = vld [vmem:[%s0] sm:$0xf]
  %v659 = vld [vmem:[%s0 + $0x4] sm:$0xf]
  %v660 = vld [vmem:[%s0 + $0x8] sm:$0xf]
  %v661 = vld [vmem:[%s0 + $0xc] sm:$0xf]
  %v662 = vld [vmem:[%s0 + $0x10] sm:$0xf]
  %v663 = vld [vmem:[%s0 + $0x14] sm:$0xf]
  %v664 = vld [vmem:[%s0 + $0x18] sm:$0xf]
  %v665 = vld [vmem:[%s0 + $0x1c] sm:$0xf]
  %v666 = vld [vmem:[%s0 + $0x20] sm:$0xf]
  %v667 = vld [vmem:[%s0 + $0x24] sm:$0xf]
  %v668 = vld [vmem:[%s0 + $0x28] sm:$0xf]
  %v669 = vld [vmem:[%s0 + $0x2c] sm:$0xf]
  %v670 = vld [vmem:[%s0 + $0x30] sm:$0xf]
  %v671 = vld [vmem:[%s0 + $0x34] sm:$0xf]
  %v672 = vld [vmem:[%s0 + $0x38] sm:$0xf]
  %v673 = vld [vmem:[%s0 + $0x3c] sm:$0xf]
  %v674 = vpack.c.bf16 %v643, %v642
  %v675 = vpack.c.bf16 %v645, %v644
  %v676 = vpack.c.bf16 %v647, %v646
  %v677 = vpack.c.bf16 %v649, %v648
  %v678 = vpack.c.bf16 %v651, %v650
  %v679 = vpack.c.bf16 %v653, %v652
  %v680 = vpack.c.bf16 %v655, %v654
  %v681 = vpack.c.bf16 %v657, %v656
  %v682 = vld [vmem:[%s9] sm:$0x1]
  %v684 = vlaneseq
  %v685 = vshrl.u32 %v684, 7
  %v686 = vsub.s32 0, %v685
  %v687 = vrot.slane %v682, %v686
  %v705 = vunpack.c.l.b16 %v658
  %v706 = vunpack.c.l.b16 %v659
  %v707 = vunpack.c.l.b16 %v660
  %v708 = vunpack.c.l.b16 %v661
  %v709 = vunpack.c.l.b16 %v662
  %v710 = vunpack.c.l.b16 %v663
  %v711 = vunpack.c.l.b16 %v664
  %v712 = vunpack.c.l.b16 %v665
  %v713 = vunpack.c.l.b16 %v666
  %v714 = vunpack.c.l.b16 %v667
  %v715 = vunpack.c.l.b16 %v668
  %v716 = vunpack.c.l.b16 %v669
  %v717 = vunpack.c.l.b16 %v670
  %v718 = vunpack.c.l.b16 %v671
  %v719 = vunpack.c.l.b16 %v672
  %v720 = vunpack.c.l.b16 %v673
  %v721 = vpack.c.b16 %v706, %v705
  %v722 = vpack.c.b16 %v708, %v707
  %v723 = vpack.c.b16 %v710, %v709
  %v724 = vpack.c.b16 %v712, %v711
  %v725 = vpack.c.b16 %v714, %v713
  %v726 = vpack.c.b16 %v716, %v715
  %v727 = vpack.c.b16 %v718, %v717
  %v728 = vpack.c.b16 %v720, %v719
  %737 = vmatprep.subr.bf16.mxu0 0
  %738 = vmatpush1.bf16.msra.mxu0 %v674
  %739 = vmatprep.subr.bf16.mxu0 0
  %740 = vmatpush1.bf16.msra.mxu0 %v675
  %741 = vmatprep.subr.bf16.mxu0 0
  %742 = vmatpush1.bf16.msra.mxu0 %v676
  %743 = vmatprep.subr.bf16.mxu0 0
  %744 = vmatpush1.bf16.msra.mxu0 %v677
  %745 = vmatprep.subr.bf16.mxu0 0
  %746 = vmatpush1.bf16.msra.mxu0 %v678
  %747 = vmatprep.subr.bf16.mxu0 0
  %748 = vmatpush1.bf16.msra.mxu0 %v679
  %749 = vmatprep.subr.bf16.mxu0 0
  %750 = vmatpush1.bf16.msra.mxu0 %v680
  %751 = vmatprep.subr.bf16.mxu0 0
  %752 = vmatpush1.bf16.msra.mxu0 %v681
  %753 = vmatprep.subr.bf16.mxu0 0
  %754 = vmatpush1.bf16.msra.mxu0 0
  %755 = vmatprep.subr.bf16.mxu0 0
  %756 = vmatpush1.bf16.msra.mxu0 0
  %757 = vmatprep.subr.bf16.mxu0 0
  %758 = vmatpush1.bf16.msra.mxu0 0
  %759 = vmatprep.subr.bf16.mxu0 0
  %760 = vmatpush1.bf16.msra.mxu0 0
  %761 = vmatprep.subr.bf16.mxu0 0
  %762 = vmatpush1.bf16.msra.mxu0 0
  %763 = vmatprep.subr.bf16.mxu0 0
  %764 = vmatpush1.bf16.msra.mxu0 0
  %765 = vmatprep.subr.bf16.mxu0 0
  %766 = vmatpush1.bf16.msra.mxu0 0
  %767 = vmatprep.subr.bf16.mxu0 0
  %768 = vmatpush1.bf16.msra.mxu0 0
  %769 = vmatprep.mubr.bf16.mxu0 0
  %770 = vmatmul.mubr.bf16.gmra.mrb[0].mxu0 %v721
  %v771 = vpop.f32.mrb[0].mxu0
  %v772 = vadd.f32 %v687, %v771
  %v773 = vpop.f32.mrb[0].mxu0
  %v774 = vpop.f32.mrb[0].mxu0
  %v775 = vadd.f32 %v687, %v774
  %v776 = vpop.f32.mrb[0].mxu0
  %777 = vmatprep.mubr.bf16.mxu0 0
  %778 = vmatmul.mubr.bf16.gmra.mrb[0].mxu0 %v722
  %v779 = vpop.f32.mrb[0].mxu0
  %v780 = vadd.f32 %v687, %v779
  %v781 = vpop.f32.mrb[0].mxu0
  %v782 = vpop.f32.mrb[0].mxu0
  %v783 = vadd.f32 %v687, %v782
  %v784 = vpop.f32.mrb[0].mxu0
  %785 = vmatprep.mubr.bf16.mxu0 0
  %786 = vmatmul.mubr.bf16.gmra.mrb[0].mxu0 %v723
  %v787 = vpop.f32.mrb[0].mxu0
  %v788 = vadd.f32 %v687, %v787
  %v789 = vpop.f32.mrb[0].mxu0
  %v790 = vpop.f32.mrb[0].mxu0
  %v791 = vadd.f32 %v687, %v790
  %v792 = vpop.f32.mrb[0].mxu0
  %793 = vmatprep.mubr.bf16.mxu0 0
  %794 = vmatmul.mubr.bf16.gmra.mrb[0].mxu0 %v724
  %v795 = vpop.f32.mrb[0].mxu0
  %v796 = vadd.f32 %v687, %v795
  %v797 = vpop.f32.mrb[0].mxu0
  %v798 = vpop.f32.mrb[0].mxu0
  %v799 = vadd.f32 %v687, %v798
  %v800 = vpop.f32.mrb[0].mxu0
  %801 = vmatprep.mubr.bf16.mxu0 0
  %802 = vmatmul.mubr.bf16.gmra.mrb[0].mxu0 %v725
  %v803 = vpop.f32.mrb[0].mxu0
  %v804 = vadd.f32 %v687, %v803
  %v805 = vpop.f32.mrb[0].mxu0
  %v806 = vpop.f32.mrb[0].mxu0
  %v807 = vadd.f32 %v687, %v806
  %v808 = vpop.f32.mrb[0].mxu0
  %809 = vmatprep.mubr.bf16.mxu0 0
  %810 = vmatmul.mubr.bf16.gmra.mrb[0].mxu0 %v726
  %v811 = vpop.f32.mrb[0].mxu0
  %v812 = vadd.f32 %v687, %v811
  %v813 = vpop.f32.mrb[0].mxu0
  %v814 = vpop.f32.mrb[0].mxu0
  %v815 = vadd.f32 %v687, %v814
  %v816 = vpop.f32.mrb[0].mxu0
  %817 = vmatprep.mubr.bf16.mxu0 0
  %818 = vmatmul.mubr.bf16.gmra.mrb[0].mxu0 %v727
  %v819 = vpop.f32.mrb[0].mxu0
  %v820 = vadd.f32 %v687, %v819
  %v821 = vpop.f32.mrb[0].mxu0
  %v822 = vpop.f32.mrb[0].mxu0
  %v823 = vadd.f32 %v687, %v822
  %v824 = vpop.f32.mrb[0].mxu0
  %825 = vmatprep.mubr.bf16.mxu0 0
  %826 = vmatmul.mubr.bf16.gmra.mrb[0].mxu0 %v728
  %v827 = vpop.f32.mrb[0].mxu0
  %v828 = vadd.f32 %v687, %v827
  %v829 = vpop.f32.mrb[0].mxu0
  %v830 = vpop.f32.mrb[0].mxu0
  %v831 = vadd.f32 %v687, %v830
  %v832 = vpop.f32.mrb[0].mxu0
  %833 = vdwg.mxu0
  %v834 = vmax.f32 %v772, 0.0
  %v835 = vmax.f32 %v775, 0.0
  %v836 = vmax.f32 %v780, 0.0
  %v837 = vmax.f32 %v783, 0.0
  %v838 = vmax.f32 %v788, 0.0
  %v839 = vmax.f32 %v791, 0.0
  %v840 = vmax.f32 %v796, 0.0
  %v841 = vmax.f32 %v799, 0.0
  %v842 = vmax.f32 %v804, 0.0
  %v843 = vmax.f32 %v807, 0.0
  %v844 = vmax.f32 %v812, 0.0
  %v845 = vmax.f32 %v815, 0.0
  %v846 = vmax.f32 %v820, 0.0
  %v847 = vmax.f32 %v823, 0.0
  %v848 = vmax.f32 %v828, 0.0
  %v849 = vmax.f32 %v831, 0.0
  %v850 = vpack.c.bf16 %v835, %v834
  %v851 = vpack.c.bf16 %v837, %v836
  %v852 = vpack.c.bf16 %v839, %v838
  %v853 = vpack.c.bf16 %v841, %v840
  %v854 = vpack.c.bf16 %v843, %v842
  %v855 = vpack.c.bf16 %v845, %v844
  %v856 = vpack.c.bf16 %v847, %v846
  %v857 = vpack.c.bf16 %v849, %v848
  %v858 = vld [vmem:[%s10] sm:$0xf]
  %v859 = vld [vmem:[%s10 + $0x4] sm:$0xf]
  %v860 = vld [vmem:[%s10 + $0x8] sm:$0xf]
  %v861 = vld [vmem:[%s10 + $0xc] sm:$0xf]
  %v862 = vld [vmem:[%s10 + $0x10] sm:$0xf]
  %v863 = vld [vmem:[%s10 + $0x14] sm:$0xf]
  %v864 = vld [vmem:[%s10 + $0x18] sm:$0xf]
  %v865 = vld [vmem:[%s10 + $0x1c] sm:$0xf]
  %v866 = vld [vmem:[%s10 + $0x20] sm:$0xf]
  %v867 = vld [vmem:[%s10 + $0x24] sm:$0xf]
  %v868 = vld [vmem:[%s10 + $0x28] sm:$0xf]
  %v869 = vld [vmem:[%s10 + $0x2c] sm:$0xf]
  %v870 = vld [vmem:[%s10 + $0x30] sm:$0xf]
  %v871 = vld [vmem:[%s10 + $0x34] sm:$0xf]
  %v872 = vld [vmem:[%s10 + $0x38] sm:$0xf]
  %v873 = vld [vmem:[%s10 + $0x3c] sm:$0xf]
  %v890 = vunpack.c.l.b16 %v858
  %v891 = vunpack.c.l.b16 %v859
  %v892 = vunpack.c.l.b16 %v860
  %v893 = vunpack.c.l.b16 %v861
  %v894 = vunpack.c.l.b16 %v862
  %v895 = vunpack.c.l.b16 %v863
  %v896 = vunpack.c.l.b16 %v864
  %v897 = vunpack.c.l.b16 %v865
  %v898 = vunpack.c.l.b16 %v866
  %v899 = vunpack.c.l.b16 %v867
  %v900 = vunpack.c.l.b16 %v868
  %v901 = vunpack.c.l.b16 %v869
  %v902 = vunpack.c.l.b16 %v870
  %v903 = vunpack.c.l.b16 %v871
  %v904 = vunpack.c.l.b16 %v872
  %v905 = vunpack.c.l.b16 %v873
  %v906 = vpack.c.b16 %v891, %v890
  %v907 = vpack.c.b16 %v893, %v892
  %v908 = vpack.c.b16 %v895, %v894
  %v909 = vpack.c.b16 %v897, %v896
  %v910 = vpack.c.b16 %v899, %v898
  %v911 = vpack.c.b16 %v901, %v900
  %v912 = vpack.c.b16 %v903, %v902
  %v913 = vpack.c.b16 %v905, %v904
  %922 = vmatprep.subr.bf16.mxu0 0
  %923 = vmatpush1.bf16.msra.mxu0 %v906
  %924 = vmatprep.subr.bf16.mxu0 0
  %925 = vmatpush1.bf16.msra.mxu0 %v907
  %926 = vmatprep.subr.bf16.mxu0 0
  %927 = vmatpush1.bf16.msra.mxu0 %v908
  %928 = vmatprep.subr.bf16.mxu0 0
  %929 = vmatpush1.bf16.msra.mxu0 %v909
  %930 = vmatprep.subr.bf16.mxu0 0
  %931 = vmatpush1.bf16.msra.mxu0 %v910
  %932 = vmatprep.subr.bf16.mxu0 0
  %933 = vmatpush1.bf16.msra.mxu0 %v911
  %934 = vmatprep.subr.bf16.mxu0 0
  %935 = vmatpush1.bf16.msra.mxu0 %v912
  %936 = vmatprep.subr.bf16.mxu0 0
  %937 = vmatpush1.bf16.msra.mxu0 %v913
  %938 = vmatprep.subr.bf16.mxu0 0
  %939 = vmatpush1.bf16.msra.mxu0 0
  %940 = vmatprep.subr.bf16.mxu0 0
  %941 = vmatpush1.bf16.msra.mxu0 0
  %942 = vmatprep.subr.bf16.mxu0 0
  %943 = vmatpush1.bf16.msra.mxu0 0
  %944 = vmatprep.subr.bf16.mxu0 0
  %945 = vmatpush1.bf16.msra.mxu0 0
  %946 = vmatprep.subr.bf16.mxu0 0
  %947 = vmatpush1.bf16.msra.mxu0 0
  %948 = vmatprep.subr.bf16.mxu0 0
  %949 = vmatpush1.bf16.msra.mxu0 0
  %950 = vmatprep.subr.bf16.mxu0 0
  %951 = vmatpush1.bf16.msra.mxu0 0
  %952 = vmatprep.subr.bf16.mxu0 0
  %953 = vmatpush1.bf16.msra.mxu0 0
  %954 = vmatprep.mubr.bf16.mxu0 0
  %955 = vmatmul.mubr.bf16.gmra.mrb[0].mxu0 %v850
  %v956 = vpop.f32.mrb[0].mxu0
  %v957 = vadd.f32 0.0, %v956
  %v958 = vpop.f32.mrb[0].mxu0
  %v959 = vpop.f32.mrb[0].mxu0
  %v960 = vadd.f32 0.0, %v959
  %v961 = vpop.f32.mrb[0].mxu0
  %962 = vmatprep.mubr.bf16.mxu0 0
  %963 = vmatmul.mubr.bf16.gmra.mrb[0].mxu0 %v851
  %v964 = vpop.f32.mrb[0].mxu0
  %v965 = vadd.f32 0.0, %v964
  %v966 = vpop.f32.mrb[0].mxu0
  %v967 = vpop.f32.mrb[0].mxu0
  %v968 = vadd.f32 0.0, %v967
  %v969 = vpop.f32.mrb[0].mxu0
  %970 = vmatprep.mubr.bf16.mxu0 0
  %971 = vmatmul.mubr.bf16.gmra.mrb[0].mxu0 %v852
  %v972 = vpop.f32.mrb[0].mxu0
  %v973 = vadd.f32 0.0, %v972
  %v974 = vpop.f32.mrb[0].mxu0
  %v975 = vpop.f32.mrb[0].mxu0
  %v976 = vadd.f32 0.0, %v975
  %v977 = vpop.f32.mrb[0].mxu0
  %978 = vmatprep.mubr.bf16.mxu0 0
  %979 = vmatmul.mubr.bf16.gmra.mrb[0].mxu0 %v853
  %v980 = vpop.f32.mrb[0].mxu0
  %v981 = vadd.f32 0.0, %v980
  %v982 = vpop.f32.mrb[0].mxu0
  %v983 = vpop.f32.mrb[0].mxu0
  %v984 = vadd.f32 0.0, %v983
  %v985 = vpop.f32.mrb[0].mxu0
  %986 = vmatprep.mubr.bf16.mxu0 0
  %987 = vmatmul.mubr.bf16.gmra.mrb[0].mxu0 %v854
  %v988 = vpop.f32.mrb[0].mxu0
  %v989 = vadd.f32 0.0, %v988
  %v990 = vpop.f32.mrb[0].mxu0
  %v991 = vpop.f32.mrb[0].mxu0
  %v992 = vadd.f32 0.0, %v991
  %v993 = vpop.f32.mrb[0].mxu0
  %994 = vmatprep.mubr.bf16.mxu0 0
  %995 = vmatmul.mubr.bf16.gmra.mrb[0].mxu0 %v855
  %v996 = vpop.f32.mrb[0].mxu0
  %v997 = vadd.f32 0.0, %v996
  %v998 = vpop.f32.mrb[0].mxu0
  %v999 = vpop.f32.mrb[0].mxu0
  %v1000 = vadd.f32 0.0, %v999
  %v1001 = vpop.f32.mrb[0].mxu0
  %1002 = vmatprep.mubr.bf16.mxu0 0
  %1003 = vmatmul.mubr.bf16.gmra.mrb[0].mxu0 %v856
  %v1004 = vpop.f32.mrb[0].mxu0
  %v1005 = vadd.f32 0.0, %v1004
  %v1006 = vpop.f32.mrb[0].mxu0
  %v1007 = vpop.f32.mrb[0].mxu0
  %v1008 = vadd.f32 0.0, %v1007
  %v1009 = vpop.f32.mrb[0].mxu0
  %1010 = vmatprep.mubr.bf16.mxu0 0
  %1011 = vmatmul.mubr.bf16.gmra.mrb[0].mxu0 %v857
  %v1012 = vpop.f32.mrb[0].mxu0
  %v1013 = vadd.f32 0.0, %v1012
  %v1014 = vpop.f32.mrb[0].mxu0
  %v1015 = vpop.f32.mrb[0].mxu0
  %v1016 = vadd.f32 0.0, %v1015
  %v1017 = vpop.f32.mrb[0].mxu0
  %1018 = vdwg.mxu0
  %v1019 = vpack.c.bf16 %v960, %v957
  %v1020 = vpack.c.bf16 %v968, %v965
  %v1021 = vpack.c.bf16 %v976, %v973
  %v1022 = vpack.c.bf16 %v984, %v981
  %v1023 = vpack.c.bf16 %v992, %v989
  %v1024 = vpack.c.bf16 %v1000, %v997
  %v1025 = vpack.c.bf16 %v1008, %v1005
  %v1026 = vpack.c.bf16 %v1016, %v1013
  %v1027 = vld [vmem:[%s11] sm:$0x1]
  %v1029 = vlaneseq
  %v1030 = vshrl.u32 %v1029, 7
  %v1031 = vsub.s32 0, %v1030
  %v1032 = vrot.slane %v1027, %v1031
  %1034 = vmatprep.subr.bf16.mxu0 0
  %1035 = vmatpush1.bf16.msra.mxu0 %v1019
  %1036 = vmatprep.subr.bf16.mxu0 0
  %1037 = vmatpush1.bf16.msra.mxu0 %v1020
  %1038 = vmatprep.subr.bf16.mxu0 0
  %1039 = vmatpush1.bf16.msra.mxu0 %v1021
  %1040 = vmatprep.subr.bf16.mxu0 0
  %1041 = vmatpush1.bf16.msra.mxu0 %v1022
  %1042 = vmatprep.subr.bf16.mxu0 0
  %1043 = vmatpush1.bf16.msra.mxu0 %v1023
  %1044 = vmatprep.subr.bf16.mxu0 0
  %1045 = vmatpush1.bf16.msra.mxu0 %v1024
  %1046 = vmatprep.subr.bf16.mxu0 0
  %1047 = vmatpush1.bf16.msra.mxu0 %v1025
  %1048 = vmatprep.subr.bf16.mxu0 0
  %1049 = vmatpush1.bf16.msra.mxu0 %v1026
  %1050 = vmatprep.subr.bf16.mxu0 0
  %1051 = vmatpush1.bf16.msra.mxu0 0
  %1052 = vmatprep.subr.bf16.mxu0 0
  %1053 = vmatpush1.bf16.msra.mxu0 0
  %1054 = vmatprep.subr.bf16.mxu0 0
  %1055 = vmatpush1.bf16.msra.mxu0 0
  %1056 = vmatprep.subr.bf16.mxu0 0
  %1057 = vmatpush1.bf16.msra.mxu0 0
  %1058 = vmatprep.subr.bf16.mxu0 0
  %1059 = vmatpush1.bf16.msra.mxu0 0
  %1060 = vmatprep.subr.bf16.mxu0 0
  %1061 = vmatpush1.bf16.msra.mxu0 0
  %1062 = vmatprep.subr.bf16.mxu0 0
  %1063 = vmatpush1.bf16.msra.mxu0 0
  %1064 = vmatprep.subr.bf16.mxu0 0
  %1065 = vmatpush1.bf16.msra.mxu0 0
  %1066 = vmatprep.mubr.bf16.mxu0 0
  %1067 = vmatmul.mubr.bf16.gmra.mrb[0].mxu0 %v721
  %v1068 = vpop.f32.mrb[0].mxu0
  %v1069 = vadd.f32 %v1032, %v1068
  %v1070 = vpop.f32.mrb[0].mxu0
  %v1071 = vpop.f32.mrb[0].mxu0
  %v1072 = vadd.f32 %v1032, %v1071
  %v1073 = vpop.f32.mrb[0].mxu0
  %1074 = vmatprep.mubr.bf16.mxu0 0
  %1075 = vmatmul.mubr.bf16.gmra.mrb[0].mxu0 %v722
  %v1076 = vpop.f32.mrb[0].mxu0
  %v1077 = vadd.f32 %v1032, %v1076
  %v1078 = vpop.f32.mrb[0].mxu0
  %v1079 = vpop.f32.mrb[0].mxu0
  %v1080 = vadd.f32 %v1032, %v1079
  %v1081 = vpop.f32.mrb[0].mxu0
  %1082 = vmatprep.mubr.bf16.mxu0 0
  %1083 = vmatmul.mubr.bf16.gmra.mrb[0].mxu0 %v723
  %v1084 = vpop.f32.mrb[0].mxu0
  %v1085 = vadd.f32 %v1032, %v1084
  %v1086 = vpop.f32.mrb[0].mxu0
  %v1087 = vpop.f32.mrb[0].mxu0
  %v1088 = vadd.f32 %v1032, %v1087
  %v1089 = vpop.f32.mrb[0].mxu0
  %1090 = vmatprep.mubr.bf16.mxu0 0
  %1091 = vmatmul.mubr.bf16.gmra.mrb[0].mxu0 %v724
  %v1092 = vpop.f32.mrb[0].mxu0
  %v1093 = vadd.f32 %v1032, %v1092
  %v1094 = vpop.f32.mrb[0].mxu0
  %v1095 = vpop.f32.mrb[0].mxu0
  %v1096 = vadd.f32 %v1032, %v1095
  %v1097 = vpop.f32.mrb[0].mxu0
  %1098 = vmatprep.mubr.bf16.mxu0 0
  %1099 = vmatmul.mubr.bf16.gmra.mrb[0].mxu0 %v725
  %v1100 = vpop.f32.mrb[0].mxu0
  %v1101 = vadd.f32 %v1032, %v1100
  %v1102 = vpop.f32.mrb[0].mxu0
  %v1103 = vpop.f32.mrb[0].mxu0
  %v1104 = vadd.f32 %v1032, %v1103
  %v1105 = vpop.f32.mrb[0].mxu0
  %1106 = vmatprep.mubr.bf16.mxu0 0
  %1107 = vmatmul.mubr.bf16.gmra.mrb[0].mxu0 %v726
  %v1108 = vpop.f32.mrb[0].mxu0
  %v1109 = vadd.f32 %v1032, %v1108
  %v1110 = vpop.f32.mrb[0].mxu0
  %v1111 = vpop.f32.mrb[0].mxu0
  %v1112 = vadd.f32 %v1032, %v1111
  %v1113 = vpop.f32.mrb[0].mxu0
  %1114 = vmatprep.mubr.bf16.mxu0 0
  %1115 = vmatmul.mubr.bf16.gmra.mrb[0].mxu0 %v727
  %v1116 = vpop.f32.mrb[0].mxu0
  %v1117 = vadd.f32 %v1032, %v1116
  %v1118 = vpop.f32.mrb[0].mxu0
  %v1119 = vpop.f32.mrb[0].mxu0
  %v1120 = vadd.f32 %v1032, %v1119
  %v1121 = vpop.f32.mrb[0].mxu0
  %1122 = vmatprep.mubr.bf16.mxu0 0
  %1123 = vmatmul.mubr.bf16.gmra.mrb[0].mxu0 %v728
  %v1124 = vpop.f32.mrb[0].mxu0
  %v1125 = vadd.f32 %v1032, %v1124
  %v1126 = vpop.f32.mrb[0].mxu0
  %v1127 = vpop.f32.mrb[0].mxu0
  %v1128 = vadd.f32 %v1032, %v1127
  %v1129 = vpop.f32.mrb[0].mxu0
  %1130 = vdwg.mxu0
  %1131 = vst [vmem:[%s12] sm:$0xff] %v1069
  %1132 = vst [vmem:[%s12 + $0x8] sm:$0xff] %v1072
  %1133 = vst [vmem:[%s12 + $0x10] sm:$0xff] %v1077
  %1134 = vst [vmem:[%s12 + $0x18] sm:$0xff] %v1080
  %1135 = vst [vmem:[%s12 + $0x20] sm:$0xff] %v1085
  %1136 = vst [vmem:[%s12 + $0x28] sm:$0xff] %v1088
  %1137 = vst [vmem:[%s12 + $0x30] sm:$0xff] %v1093
  %1138 = vst [vmem:[%s12 + $0x38] sm:$0xff] %v1096
  %1139 = vst [vmem:[%s12 + $0x40] sm:$0xff] %v1101
  %1140 = vst [vmem:[%s12 + $0x48] sm:$0xff] %v1104
  %1141 = vst [vmem:[%s12 + $0x50] sm:$0xff] %v1109
  %1142 = vst [vmem:[%s12 + $0x58] sm:$0xff] %v1112
  %1143 = vst [vmem:[%s12 + $0x60] sm:$0xff] %v1117
  %1144 = vst [vmem:[%s12 + $0x68] sm:$0xff] %v1120
  %1145 = vst [vmem:[%s12 + $0x70] sm:$0xff] %v1125
  %1146 = vst [vmem:[%s12 + $0x78] sm:$0xff] %v1128
  // Predicated region
  $region50: #{bert_gcn_forward.1} parent=0 // pred_check
    _
  $region51: #{bert_gcn_forward.1} parent=0 // pred_check_branch
    %1148 = sbr.rel (0) target = $region53
  $region52: #{bert_gcn_forward.1} parent=0 // pred_region
    _
  $region53: #{bert_gcn_forward.1} parent=0 // pred_fallthru
    _
  // Predicated region
  $region54: #{bert_gcn_forward.1} parent=0 // pred_check
    _
  $region55: #{bert_gcn_forward.1} parent=0 // pred_check_branch
    %1150 = sbr.rel (0) target = $region57
  $region56: #{bert_gcn_forward.1} parent=0 // pred_region
    _
  $region57: #{bert_gcn_forward.1} parent=0 // pred_fallthru
    _

</llo_original>
